<compile_context>
chip_gen: v5e
topology: v5e:2x2
jax: 0.10.0
libtpu: 0.0.40
codegen_flags: <defaults>
</compile_context>

<pallas_src>
import numpy as np
import jax
import jax.numpy as jnp
from jax import lax
from jax.experimental import pallas as pl
from jax.experimental.pallas import tpu as pltpu

N0 = 20          # number of lambda weights / rows of vecX
N1 = 6           # feature dimension
TB = 128         # candidates per grid block (sublane axis of the LHS)
U_ROW = 32       # row of the shared block that carries vecU (any row > N0)
ONES_COL = N1    # column of the shared block that carries the ones vector

# Shared block xaug (128, 128) f32 layout:
#   rows 0..N0-1, cols 0..N1-1 : vecX
#   rows 0..N0-1, col  N1      : 1.0   (produces s0 from the same matmul)
#   row  U_ROW,   cols 0..N1-1 : vecU  (never multiplied: lambda lane U_ROW is 0)
#   everything else            : 0
# Per-candidate block la (TB, 128) f32 layout:
#   lanes 0..N0-1 : lambda_   ; lane N0 : alpha ; lanes > N0 : 0


def dummy_loss_kernel(la_ref, xaug_ref, out_ref):
    la = la_ref[...]                                   # (TB, 128)
    xaug = xaug_ref[...]                               # (128, 128)

    lam_relu = jnp.maximum(la, 0.0)                    # relu; alpha/pad lanes hit zero rows of xaug
    # One MXU matmul: lanes 0..N1-1 = s1 = relu(lambda) @ vecX,
    # lane N1 = s0 = sum(relu(lambda)), lanes > N1 = 0.
    p = jnp.dot(lam_relu, xaug, preferred_element_type=jnp.float32)   # (TB, 128)

    s0 = p[:, ONES_COL:ONES_COL + 1]                   # (TB, 1)
    alpha = la[:, N0:N0 + 1]                           # (TB, 1)  raw (un-relu'd) alpha
    u_row = xaug[U_ROW:U_ROW + 1, :]                   # (1, 128): vecU in lanes 0..N1-1, else 0

    lane = lax.broadcasted_iota(jnp.int32, p.shape, 1)
    s1 = jnp.where(lane < N1, p, 0.0)                  # zero the s0 lane for the norm / L1 paths

    # loss_angle: 1/s0 and 1/||u|| cancel in
    #   tmp2 = dot(tmp1, u/||u||) / ||tmp1||  ==  dot(s1, u) / (||s1|| * ||u||)
    # (s0 = sum(relu(lambda)) >= 0), so compute it directly from s1; rsqrt -> EUP.
    dot_su = jnp.sum(p * u_row, axis=-1, keepdims=True)          # (TB, 1)
    nrm2_s1 = jnp.sum(s1 * s1, axis=-1, keepdims=True)           # (TB, 1)
    nrm2_u = jnp.sum(u_row * u_row, axis=-1, keepdims=True)      # (1, 1)
    tmp2 = dot_su * lax.rsqrt(nrm2_s1) * lax.rsqrt(nrm2_u)
    # Clamp guards f32 rounding when s1 is (anti)parallel to vecU (torch: NaN).
    loss_angle = jnp.sqrt(jnp.maximum(1.0 - tmp2, 0.0))           # (TB, 1)

    # loss_L1 needs the real tmp1 = s1 / s0.  approx=False is a full-precision
    # divide (not EUP vrcp) — kept deliberately so s0 == 0 gives inf/NaN like
    # torch; it is one op per candidate and not on the binding path.
    inv_s0 = pl.reciprocal(s0, approx=False)                      # (TB, 1)
    loss_l1 = jnp.sum(jnp.abs(alpha * u_row - s1 * inv_s0),
                      axis=-1, keepdims=True)                     # (TB, 1)

    loss_alpha = -alpha

    # Lane-dense writeback: single unmasked (TB, 128) store.
    res = jnp.where(lane == 0, loss_angle, 0.0)
    res = jnp.where(lane == 1, loss_l1, res)
    res = jnp.where(lane == 2, loss_alpha, res)
    out_ref[...] = res


def make_dummy_forward(vecX, vecU, block_b=TB):
    """Returns jitted forward(lambda_batch, alpha_batch) -> (angle, L1, alpha) each (B,)."""
    # Pack the shared operand ONCE on the host (numpy): it becomes a jit
    # constant, so no scatter / transpose HLOs appear in the per-call graph.
    xaug_np = np.zeros((128, 128), np.float32)
    xaug_np[0:N0, 0:N1] = np.asarray(vecX, dtype=np.float32).reshape(N0, N1)
    xaug_np[0:N0, ONES_COL] = 1.0
    xaug_np[U_ROW, 0:N1] = np.asarray(vecU, dtype=np.float32).reshape(N1)
    xaug = jnp.asarray(xaug_np)

    @jax.jit
    def forward(lambda_batch, alpha_batch):
        lam = jnp.asarray(lambda_batch, jnp.float32).reshape(-1, N0)
        alp = jnp.asarray(alpha_batch, jnp.float32).reshape(-1, 1)
        b = lam.shape[0]
        b_pad = ((b + block_b - 1) // block_b) * block_b
        la = jnp.concatenate([lam, alp], axis=1)                   # (b, N0+1)
        la = jnp.pad(la, ((0, b_pad - b), (0, 128 - (N0 + 1))))    # (b_pad, 128)

        out = pl.pallas_call(
            dummy_loss_kernel,
            out_shape=jax.ShapeDtypeStruct((b_pad, 128), jnp.float32),
            grid_spec=pltpu.PrefetchScalarGridSpec(
                num_scalar_prefetch=0,
                grid=(b_pad // block_b,),
                in_specs=[pl.BlockSpec((block_b, 128), lambda i: (i, 0)),
                          pl.BlockSpec((128, 128), lambda i: (0, 0))],
                out_specs=pl.BlockSpec((block_b, 128), lambda i: (i, 0))),
            compiler_params=pltpu.CompilerParams(
                dimension_semantics=("parallel",)),
        )(la, xaug)
        return out[:b, 0], out[:b, 1], out[:b, 2]

    return forward


def dummy_model_forward(lambda_, alpha, vecX, vecU):
    """Module-equivalent single forward(): three scalar losses."""
    forward = make_dummy_forward(vecX, vecU)
    a, l1, la = forward(jnp.reshape(lambda_, (1, N0)), jnp.reshape(alpha, (1,)))
    return a[0], l1[0], la[0]


def dummy_model_forward_ref(lambda_, alpha, vecX, vecU):
    """Pure-JAX reference (same clamp as the kernel for the sqrt rounding case)."""
    vecU_norm = vecU / jnp.linalg.norm(vecU)
    tmp0 = jnp.maximum(lambda_, 0.0)
    tmp1 = (tmp0 / jnp.sum(tmp0)) @ vecX
    tmp2 = jnp.dot(tmp1, vecU_norm) / jnp.linalg.norm(tmp1)
    loss_angle = jnp.sqrt(jnp.maximum(1.0 - tmp2, 0.0))
    loss_L1 = jnp.sum(jnp.abs(alpha * vecU - tmp1))
    loss_alpha = -alpha
    return loss_angle, loss_L1, loss_alpha


if __name__ == "__main__":
    key = jax.random.PRNGKey(0)
    k_u, k_x, k_lam, k_alp = jax.random.split(key, 4)

    vecU = jax.random.normal(k_u, (N1,), dtype=jnp.float32)
    vecX = jax.random.normal(k_x, (N0, N1), dtype=jnp.float32)

    # Batch of candidate parameter vectors (as the L-BFGS drivers would
    # evaluate).  Lambdas include negatives so the relu actually matters.
    B = 200
    lambda_b = jax.random.uniform(k_lam, (B, N0), dtype=jnp.float32,
                                  minval=-0.5, maxval=1.0)
    alpha_b = jax.random.uniform(k_alp, (B,), dtype=jnp.float32,
                                 minval=0.0, maxval=0.5)

    forward = make_dummy_forward(vecX, vecU)
    loss_angle, loss_l1, loss_alpha = jax.block_until_ready(
        forward(lambda_b, alpha_b))

    ref_angle, ref_l1, ref_alpha = jax.vmap(
        dummy_model_forward_ref, in_axes=(0, 0, None, None))(
            lambda_b, alpha_b, vecX, vecU)

    # loss_alpha never touches the matmul -> exact.
    np.testing.assert_allclose(np.asarray(loss_alpha), np.asarray(ref_alpha),
                               rtol=1e-6, atol=1e-6)
    # Tolerances leave headroom in case the f32 MXU contraction is lowered as
    # bf16 passes on some generations; typical observed error is ~1e-6.
    np.testing.assert_allclose(np.asarray(loss_angle), np.asarray(ref_angle),
                               rtol=2e-2, atol=1e-2)
    np.testing.assert_allclose(np.asarray(loss_l1), np.asarray(ref_l1),
                               rtol=2e-2, atol=1e-2)

    # Module-equivalent single forward (candidate 0).
    a0, l10, la0 = jax.block_until_ready(
        dummy_model_forward(lambda_b[0], alpha_b[0:1], vecX, vecU))
    np.testing.assert_allclose(np.asarray(a0), np.asarray(ref_angle[0]),
                               rtol=2e-2, atol=1e-2)
    np.testing.assert_allclose(np.asarray(l10), np.asarray(ref_l1[0]),
                               rtol=2e-2, atol=1e-2)

    print("KERNEL_OK")
</pallas_src>

<mosaic_0001>
module attributes {stable_mosaic.version = 11 : i64} {
  func.func @dummy_loss_kernel(%arg0: i32, %arg1: memref<128x128xf32, #tpu.memory_space<vmem>>, %arg2: memref<128x128xf32, #tpu.memory_space<vmem>>, %arg3: memref<128x128xf32, #tpu.memory_space<vmem>>) attributes {dimension_semantics = [#tpu.dimension_semantics<parallel>], iteration_bounds = array<i64: 2>, scalar_prefetch = 0 : i64, scratch_operands = 0 : i64, tpu.core_type = #tpu.core_type<tc>, window_params = [{transform_indices = @transform_0, window_bounds = array<i64: 128, 128>}, {pipeline_mode = #tpu.pipeline_mode<synchronous>, transform_indices = @transform_1, window_bounds = array<i64: 128, 128>}, {transform_indices = @transform_2, window_bounds = array<i64: 128, 128>}]} {
    %c0 = arith.constant 0 : index
    %c0_0 = arith.constant 0 : index
    %0 = vector.load %arg1[%c0, %c0_0] : memref<128x128xf32, #tpu.memory_space<vmem>>, vector<128x128xf32>
    %c0_1 = arith.constant 0 : index
    %c0_2 = arith.constant 0 : index
    %1 = vector.load %arg2[%c0_1, %c0_2] : memref<128x128xf32, #tpu.memory_space<vmem>>, vector<128x128xf32>
    %cst = arith.constant 0.000000e+00 : f32
    %2 = vector.broadcast %cst : f32 to vector<128x128xf32>
    %3 = arith.maximumf %0, %2 : vector<128x128xf32>
    %cst_3 = arith.constant dense<0.000000e+00> : vector<128x128xf32>
    %4 = tpu.matmul %3, %1, %cst_3 {dimension_numbers = #tpu.dot_dimension_numbers<[1], [0], [0], [1], [0, 0, 1, 1], [], []>} : vector<128x128xf32>, vector<128x128xf32>, vector<128x128xf32> -> vector<128x128xf32>
    %5 = vector.extract_strided_slice %4 {offsets = [0, 6], sizes = [128, 1], strides = [1, 1]} : vector<128x128xf32> to vector<128x1xf32>
    %6 = vector.extract_strided_slice %0 {offsets = [0, 20], sizes = [128, 1], strides = [1, 1]} : vector<128x128xf32> to vector<128x1xf32>
    %7 = vector.extract_strided_slice %1 {offsets = [32, 0], sizes = [1, 128], strides = [1, 1]} : vector<128x128xf32> to vector<1x128xf32>
    %8 = tpu.iota {dimensions = array<i32: 1>} : vector<128x128xi32>
    %c6_i32 = arith.constant 6 : i32
    %9 = vector.broadcast %c6_i32 : i32 to vector<128x128xi32>
    %10 = arith.cmpi slt, %8, %9 : vector<128x128xi32>
    %cst_4 = arith.constant 0.000000e+00 : f32
    %11 = vector.broadcast %cst_4 : f32 to vector<128x128xf32>
    %12 = arith.select %10, %4, %11 : vector<128x128xi1>, vector<128x128xf32>
    %13 = vector.broadcast %7 : vector<1x128xf32> to vector<128x128xf32>
    %14 = arith.mulf %4, %13 : vector<128x128xf32>
    %cst_5 = arith.constant dense<0.000000e+00> : vector<128xf32>
    %15 = vector.multi_reduction <add>, %14, %cst_5 [1] : vector<128x128xf32> to vector<128xf32>
    %16 = vector.shape_cast %15 : vector<128xf32> to vector<128x1xf32>
    %17 = arith.mulf %12, %12 : vector<128x128xf32>
    %cst_6 = arith.constant dense<0.000000e+00> : vector<128xf32>
    %18 = vector.multi_reduction <add>, %17, %cst_6 [1] : vector<128x128xf32> to vector<128xf32>
    %19 = vector.shape_cast %18 : vector<128xf32> to vector<128x1xf32>
    %20 = arith.mulf %7, %7 : vector<1x128xf32>
    %cst_7 = arith.constant dense<0.000000e+00> : vector<1xf32>
    %21 = vector.multi_reduction <add>, %20, %cst_7 [1] : vector<1x128xf32> to vector<1xf32>
    %22 = vector.shape_cast %21 : vector<1xf32> to vector<1x1xf32>
    %23 = math.rsqrt %19 : vector<128x1xf32>
    %24 = arith.mulf %16, %23 : vector<128x1xf32>
    %25 = math.rsqrt %22 : vector<1x1xf32>
    %26 = vector.broadcast %25 : vector<1x1xf32> to vector<128x1xf32>
    %27 = arith.mulf %24, %26 : vector<128x1xf32>
    %cst_8 = arith.constant 1.000000e+00 : f32
    %28 = vector.broadcast %cst_8 : f32 to vector<128x1xf32>
    %29 = arith.subf %28, %27 : vector<128x1xf32>
    %cst_9 = arith.constant 0.000000e+00 : f32
    %30 = vector.broadcast %cst_9 : f32 to vector<128x1xf32>
    %31 = arith.maximumf %29, %30 : vector<128x1xf32>
    %32 = math.sqrt %31 : vector<128x1xf32>
    %33 = tpu.reciprocal %5 : vector<128x1xf32> -> vector<128x1xf32>
    %34 = vector.broadcast %6 : vector<128x1xf32> to vector<128x128xf32>
    %35 = vector.broadcast %7 : vector<1x128xf32> to vector<128x128xf32>
    %36 = arith.mulf %34, %35 : vector<128x128xf32>
    %37 = vector.broadcast %33 : vector<128x1xf32> to vector<128x128xf32>
    %38 = arith.mulf %12, %37 : vector<128x128xf32>
    %39 = arith.subf %36, %38 : vector<128x128xf32>
    %40 = math.absf %39 : vector<128x128xf32>
    %cst_10 = arith.constant dense<0.000000e+00> : vector<128xf32>
    %41 = vector.multi_reduction <add>, %40, %cst_10 [1] : vector<128x128xf32> to vector<128xf32>
    %42 = vector.shape_cast %41 : vector<128xf32> to vector<128x1xf32>
    %cst_11 = arith.constant 0.000000e+00 : f32
    %43 = vector.broadcast %cst_11 : f32 to vector<128x1xf32>
    %44 = arith.subf %43, %6 : vector<128x1xf32>
    %c0_i32 = arith.constant 0 : i32
    %45 = vector.broadcast %c0_i32 : i32 to vector<128x128xi32>
    %46 = arith.cmpi eq, %8, %45 : vector<128x128xi32>
    %cst_12 = arith.constant 0.000000e+00 : f32
    %47 = vector.shape_cast %32 : vector<128x1xf32> to vector<128x1xf32>
    %48 = vector.broadcast %47 : vector<128x1xf32> to vector<128x128xf32>
    %49 = vector.broadcast %cst_12 : f32 to vector<128x128xf32>
    %50 = arith.select %46, %48, %49 : vector<128x128xi1>, vector<128x128xf32>
    %c1_i32 = arith.constant 1 : i32
    %51 = vector.broadcast %c1_i32 : i32 to vector<128x128xi32>
    %52 = arith.cmpi eq, %8, %51 : vector<128x128xi32>
    %53 = vector.shape_cast %42 : vector<128x1xf32> to vector<128x1xf32>
    %54 = vector.broadcast %53 : vector<128x1xf32> to vector<128x128xf32>
    %55 = arith.select %52, %54, %50 : vector<128x128xi1>, vector<128x128xf32>
    %c2_i32 = arith.constant 2 : i32
    %56 = vector.broadcast %c2_i32 : i32 to vector<128x128xi32>
    %57 = arith.cmpi eq, %8, %56 : vector<128x128xi32>
    %58 = vector.shape_cast %44 : vector<128x1xf32> to vector<128x1xf32>
    %59 = vector.broadcast %58 : vector<128x1xf32> to vector<128x128xf32>
    %60 = arith.select %57, %59, %55 : vector<128x128xi1>, vector<128x128xf32>
    %c0_13 = arith.constant 0 : index
    %c0_14 = arith.constant 0 : index
    %61 = vector.load %arg3[%c0_13, %c0_14] : memref<128x128xf32, #tpu.memory_space<vmem>>, vector<128x128xf32>
    tpu.vector_store %arg3[%c0_13, %c0_14], %60 {strides = array<i32>} : memref<128x128xf32, #tpu.memory_space<vmem>>, vector<128x128xf32>,
    return
  }
  func.func @transform_0(%arg0: i32) -> (i32, i32) {
    %c0_i32 = arith.constant 0 : i32
    %c0_i32_0 = arith.constant 0 : i32
    return %arg0, %c0_i32 : i32, i32
  }
  func.func @transform_1(%arg0: i32) -> (i32, i32) {
    %c0_i32 = arith.constant 0 : i32
    %c0_i32_0 = arith.constant 0 : i32
    %c0_i32_1 = arith.constant 0 : i32
    return %c0_i32, %c0_i32_0 : i32, i32
  }
  func.func @transform_2(%arg0: i32) -> (i32, i32) {
    %c0_i32 = arith.constant 0 : i32
    %c0_i32_0 = arith.constant 0 : i32
    return %arg0, %c0_i32 : i32, i32
  }
}

</mosaic_0001>

<llo_original>
// kernel: forward.1
$region0: #{forward.1}
  #allocation0 [shape = 'u32[]', space=smem, size = 0x4, offset = 0x4, fixed_abs, tag = 'smem constant byte address 0x4 - core index']
  #allocation1 [shape = 'u32[72,128]{1,0:T(1,128)}', space=vmem, size = 0x9000, scoped, tag = 'internal scratch']
  %s0 = inlined_call_operand.vmem [shape: f32[256,128], index: 0, kind: input, shape index: {}]
  %s1 = inlined_call_operand.vmem [shape: f32[128,128], index: 1, kind: input, shape index: {}]
  %s2 = inlined_call_operand.vmem [shape: f32[256,128], index: 2, kind: output, shape index: {}]
  %s3 = sld [smem:[#allocation0]]
  $region41: #{forward.1} parent=0
    _
  %s5 = ssub.s32 1, %s3
  %s6 = scalar_select 0, %s5, %s3
  loop: start=0, step=1, limit=4
  $region2: #{forward.1} parent=0 // loop_pre_header
    _
  $region3: #{forward.1} parent=0 // loop_header
    %s8 = sphi 0, %s12
    %p9 = scmp.ge.s32.totalorder %s8, 4
    %s18 = sphi 0, %s20
    %s21 = sphi 0, %s18
    %s22 = sphi 0, %s21
    %s38 = sphi 0, %s22
    %s42 = sphi 0, %s42
    %s44 = sphi 0, %s42
    %s45 = sphi 0, %s44
    %s59 = sphi 0, %s45
    %s65 = sphi 0, %s67
    %s68 = sphi 0, %s65
    %s69 = sphi 0, %s68
    %s85 = sphi 0, %s69
  $region4: #{forward.1} parent=0 // loop_header_branch
    %11 = sbr.rel (%p9) target = $region8
  $region5: #{forward.1} parent=0 // loop_body
    %s13 = ssub.s32 %s8, 1
    %s14 = ssub.s32 %s8, 2
    %s15 = sadd.s32 %s8, 1
    %s16 = ssub.s32 %s8, %s15
    %p17 = scmp.eq.s32.totalorder %s16, 0
    %s19 = sadd.s32 %s18, 1
    %s20 = scalar_select %p17, %s18, %s19
    %p23 = pneg %p17
    %p24 = scmp.eq.s32.totalorder %s8, 1
    %p25 = por %p23, %p24
    %p26 = scmp.ne.s32.totalorder %s18, %s21
    %p27 = scmp.eq.s32.totalorder %s8, 0
    %p28 = por %p26, %p27
    %p29 = scmp.ne.s32.totalorder %s18, %s21
    %p30 = scmp.eq.s32.totalorder %s13, 1
    %p31 = por %p29, %p30
    %p32 = scmp.ne.s32.totalorder %s21, %s22
    %p33 = scmp.eq.s32.totalorder %s13, 0
    %p34 = por %p32, %p33
    %p35 = scmp.ne.s32.totalorder %s21, %s22
    %p36 = scmp.eq.s32.totalorder %s14, 1
    %p37 = por %p35, %p36
    %p39 = scmp.ne.s32.totalorder %s22, %s38
    %p40 = scmp.eq.s32.totalorder %s14, 0
    %p41 = por %p39, %p40
    %s43 = sadd.s32 %s42, 1
    %p46 = scmp.eq.s32.totalorder %s8, 1
    %p47 = scmp.ne.s32.totalorder %s42, %s44
    %p48 = scmp.eq.s32.totalorder %s8, 0
    %p49 = por %p47, %p48
    %p50 = scmp.ne.s32.totalorder %s42, %s44
    %p51 = scmp.eq.s32.totalorder %s13, 1
    %p52 = por %p50, %p51
    %p53 = scmp.ne.s32.totalorder %s44, %s45
    %p54 = scmp.eq.s32.totalorder %s13, 0
    %p55 = por %p53, %p54
    %p56 = scmp.ne.s32.totalorder %s44, %s45
    %p57 = scmp.eq.s32.totalorder %s14, 1
    %p58 = por %p56, %p57
    %p60 = scmp.ne.s32.totalorder %s45, %s59
    %p61 = scmp.eq.s32.totalorder %s14, 0
    %p62 = por %p60, %p61
    %s63 = ssub.s32 %s8, %s15
    %p64 = scmp.eq.s32.totalorder %s63, 0
    %s66 = sadd.s32 %s65, 1
    %s67 = scalar_select %p64, %s65, %s66
    %p70 = pneg %p64
    %p71 = scmp.eq.s32.totalorder %s8, 1
    %p72 = por %p70, %p71
    %p73 = scmp.ne.s32.totalorder %s65, %s68
    %p74 = scmp.eq.s32.totalorder %s8, 0
    %p75 = por %p73, %p74
    %p76 = scmp.ne.s32.totalorder %s65, %s68
    %p77 = scmp.eq.s32.totalorder %s13, 1
    %p78 = por %p76, %p77
    %p79 = scmp.ne.s32.totalorder %s68, %s69
    %p80 = scmp.eq.s32.totalorder %s13, 0
    %p81 = por %p79, %p80
    %p82 = scmp.ne.s32.totalorder %s68, %s69
    %p83 = scmp.eq.s32.totalorder %s14, 1
    %p84 = por %p82, %p83
    %p86 = scmp.ne.s32.totalorder %s69, %s85
    %p87 = scmp.eq.s32.totalorder %s14, 0
    %p88 = por %p86, %p87
    %p89 = scmp.le.s32.totalorder 1, %s8
    %p90 = scmp.lt.s32.totalorder %s8, 3
    %p91 = pnand %p89, %p90
    %p92 = pneg %p91
    // Predicated region
    $region9: #{forward.1} parent=5 // pred_check
      _
    $region10: #{forward.1} parent=5 // pred_check_branch
      %94 = sbr.rel (%p91) target = $region12
    $region11: #{forward.1} parent=5 // pred_region
      %s95 = ssub.s32 %s8, 1
      // Predicated region
      $region13: #{forward.1} parent=11 // pred_check
        %p96 = pneg %p55
      $region14: #{forward.1} parent=11 // pred_check_branch
        %98 = sbr.rel (%p96) target = $region16
      $region15: #{forward.1} parent=11 // pred_region
        _
      $region16: #{forward.1} parent=11 // pred_fallthru
        _
    $region12: #{forward.1} parent=5 // pred_fallthru
      _
    %p99 = scmp.lt.s32.totalorder %s8, 2
    // Predicated region
    $region17: #{forward.1} parent=5 // pred_check
      %p100 = pneg %p99
    $region18: #{forward.1} parent=5 // pred_check_branch
      %102 = sbr.rel (%p100) target = $region20
    $region19: #{forward.1} parent=5 // pred_region
      // Predicated region
      $region21: #{forward.1} parent=19 // pred_check
        %p103 = pneg %p28
      $region22: #{forward.1} parent=19 // pred_check_branch
        %105 = sbr.rel (%p103) target = $region24
      $region23: #{forward.1} parent=19 // pred_region
        %s106 = smul.u32 16, %s8
        %p107 = scmp.lt.s32.totalorder %s106, 31
        %s108 = scalar_select %p107, %s106, 31
        %s109 = smul.addr %s108, 8
        %s110 = scalar_lea.vmem %s0, %s109
        %s111 = smul.u32 16, %s8
      $region24: #{forward.1} parent=19 // pred_fallthru
        _
    $region20: #{forward.1} parent=5 // pred_fallthru
      _
    %p112 = scmp.le.s32.totalorder 1, %s8
    %p113 = scmp.lt.s32.totalorder %s8, 3
    %p114 = pnand %p112, %p113
    %p115 = pneg %p114
    // Predicated region
    $region25: #{forward.1} parent=5 // pred_check
      _
    $region26: #{forward.1} parent=5 // pred_check_branch
      %117 = sbr.rel (%p114) target = $region28
    $region27: #{forward.1} parent=5 // pred_region
      %s118 = ssub.s32 %s8, 1
      %s119 = smul.u32 16, %s13
      %p120 = scmp.lt.s32.totalorder %s119, 31
      %s121 = scalar_select %p120, %s119, 31
      %s122 = smul.addr %s121, 8
      %s123 = scalar_lea.vmem %s0, %s122
      %p124 = pneg %p34
      %p125 = pneg %p31
      %p126 = pneg %p55
      %p127 = pneg %p52
      %p128 = pneg %p81
      %p129 = pneg %p78
      %s130 = smul.u32 16, %s13
      %p131 = scmp.lt.s32.totalorder %s130, 31
      %s132 = scalar_select %p131, %s130, 31
      %s133 = smul.addr %s132, 8
      %s134 = scalar_lea.vmem %s2, %s133
      %s135 = smul.u32 16, %s13
      %p136 = scmp.lt.s32.totalorder %s135, 31
      %s137 = scalar_select %p136, %s135, 31
      %s138 = smul.addr %s137, 8
      %s139 = scalar_lea.vmem %s0, %s138
      %s140 = smul.u32 16, %s13
      %s141 = smul.u32 16, %s13
      %p142 = scmp.lt.s32.totalorder %s141, 31
      %s143 = scalar_select %p142, %s141, 31
      %s144 = smul.addr %s143, 8
      %s145 = scalar_lea.vmem %s2, %s144
      %s146 = smul.u32 16, %s13
      %v147 = vld [vmem:[%s139] sm:$0xff]
      %v148 = vld [vmem:[%s139 + $0x8] sm:$0xff]
      %v149 = vld [vmem:[%s139 + $0x10] sm:$0xff]
      %v150 = vld [vmem:[%s139 + $0x18] sm:$0xff]
      %v151 = vld [vmem:[%s139 + $0x20] sm:$0xff]
      %v152 = vld [vmem:[%s139 + $0x28] sm:$0xff]
      %v153 = vld [vmem:[%s139 + $0x30] sm:$0xff]
      %v154 = vld [vmem:[%s139 + $0x38] sm:$0xff]
      %v155 = vld [vmem:[%s139 + $0x40] sm:$0xff]
      %v156 = vld [vmem:[%s139 + $0x48] sm:$0xff]
      %v157 = vld [vmem:[%s139 + $0x50] sm:$0xff]
      %v158 = vld [vmem:[%s139 + $0x58] sm:$0xff]
      %v159 = vld [vmem:[%s139 + $0x60] sm:$0xff]
      %v160 = vld [vmem:[%s139 + $0x68] sm:$0xff]
      %v161 = vld [vmem:[%s139 + $0x70] sm:$0xff]
      %v162 = vld [vmem:[%s139 + $0x78] sm:$0xff]
      %v163 = vld [vmem:[%s1] sm:$0xff]
      %v164 = vld [vmem:[%s1 + $0x8] sm:$0xff]
      %v165 = vld [vmem:[%s1 + $0x10] sm:$0xff]
      %v166 = vld [vmem:[%s1 + $0x18] sm:$0xff]
      %v167 = vld [vmem:[%s1 + $0x20] sm:$0xff]
      %v168 = vld [vmem:[%s1 + $0x28] sm:$0xff]
      %v169 = vld [vmem:[%s1 + $0x30] sm:$0xff]
      %v170 = vld [vmem:[%s1 + $0x38] sm:$0xff]
      %v171 = vld [vmem:[%s1 + $0x40] sm:$0xff]
      %v172 = vld [vmem:[%s1 + $0x48] sm:$0xff]
      %v173 = vld [vmem:[%s1 + $0x50] sm:$0xff]
      %v174 = vld [vmem:[%s1 + $0x58] sm:$0xff]
      %v175 = vld [vmem:[%s1 + $0x60] sm:$0xff]
      %v176 = vld [vmem:[%s1 + $0x68] sm:$0xff]
      %v177 = vld [vmem:[%s1 + $0x70] sm:$0xff]
      %v178 = vld [vmem:[%s1 + $0x78] sm:$0xff]
      %v179 = vmax.f32 %v147, 0.0
      %v180 = vmax.f32 %v148, 0.0
      %v181 = vmax.f32 %v149, 0.0
      %v182 = vmax.f32 %v150, 0.0
      %v183 = vmax.f32 %v151, 0.0
      %v184 = vmax.f32 %v152, 0.0
      %v185 = vmax.f32 %v153, 0.0
      %v186 = vmax.f32 %v154, 0.0
      %v187 = vmax.f32 %v155, 0.0
      %v188 = vmax.f32 %v156, 0.0
      %v189 = vmax.f32 %v157, 0.0
      %v190 = vmax.f32 %v158, 0.0
      %v191 = vmax.f32 %v159, 0.0
      %v192 = vmax.f32 %v160, 0.0
      %v193 = vmax.f32 %v161, 0.0
      %v194 = vmax.f32 %v162, 0.0
      %195 = vmatpush.msra.mxu0 %v178
      %196 = vmatpush.msra.mxu0 %v177
      %197 = vmatpush.msra.mxu0 %v176
      %198 = vmatpush.msra.mxu0 %v175
      %199 = vmatpush.msra.mxu0 %v174
      %200 = vmatpush.msra.mxu0 %v173
      %201 = vmatpush.msra.mxu0 %v172
      %202 = vmatpush.msra.mxu0 %v171
      %203 = vmatpush.msra.mxu0 %v170
      %204 = vmatpush.msra.mxu0 %v169
      %205 = vmatpush.msra.mxu0 %v168
      %206 = vmatpush.msra.mxu0 %v167
      %207 = vmatpush.msra.mxu0 %v166
      %208 = vmatpush.msra.mxu0 %v165
      %209 = vmatpush.msra.mxu0 %v164
      %210 = vmatpush.msra.mxu0 %v163
      %211 = vmatmul.f32.gmra.mxu0 %v179
      %v212 = vpop.f32.mrf.mxu0
      %v213 = vadd.f32 0.0, %v212
      %214 = vmatmul.f32.gmra.mxu0 %v180
      %v215 = vpop.f32.mrf.mxu0
      %v216 = vadd.f32 0.0, %v215
      %217 = vmatmul.f32.gmra.mxu0 %v181
      %v218 = vpop.f32.mrf.mxu0
      %v219 = vadd.f32 0.0, %v218
      %220 = vmatmul.f32.gmra.mxu0 %v182
      %v221 = vpop.f32.mrf.mxu0
      %v222 = vadd.f32 0.0, %v221
      %223 = vmatmul.f32.gmra.mxu0 %v183
      %v224 = vpop.f32.mrf.mxu0
      %v225 = vadd.f32 0.0, %v224
      %226 = vmatmul.f32.gmra.mxu0 %v184
      %v227 = vpop.f32.mrf.mxu0
      %v228 = vadd.f32 0.0, %v227
      %229 = vmatmul.f32.gmra.mxu0 %v185
      %v230 = vpop.f32.mrf.mxu0
      %v231 = vadd.f32 0.0, %v230
      %232 = vmatmul.f32.gmra.mxu0 %v186
      %v233 = vpop.f32.mrf.mxu0
      %v234 = vadd.f32 0.0, %v233
      %235 = vmatmul.f32.gmra.mxu0 %v187
      %v236 = vpop.f32.mrf.mxu0
      %v237 = vadd.f32 0.0, %v236
      %238 = vmatmul.f32.gmra.mxu0 %v188
      %v239 = vpop.f32.mrf.mxu0
      %v240 = vadd.f32 0.0, %v239
      %241 = vmatmul.f32.gmra.mxu0 %v189
      %v242 = vpop.f32.mrf.mxu0
      %v243 = vadd.f32 0.0, %v242
      %244 = vmatmul.f32.gmra.mxu0 %v190
      %v245 = vpop.f32.mrf.mxu0
      %v246 = vadd.f32 0.0, %v245
      %247 = vmatmul.f32.gmra.mxu0 %v191
      %v248 = vpop.f32.mrf.mxu0
      %v249 = vadd.f32 0.0, %v248
      %250 = vmatmul.f32.gmra.mxu0 %v192
      %v251 = vpop.f32.mrf.mxu0
      %v252 = vadd.f32 0.0, %v251
      %253 = vmatmul.f32.gmra.mxu0 %v193
      %v254 = vpop.f32.mrf.mxu0
      %v255 = vadd.f32 0.0, %v254
      %256 = vmatmul.f32.gmra.mxu0 %v194
      %v257 = vpop.f32.mrf.mxu0
      %v258 = vadd.f32 0.0, %v257
      %259 = vdwg.mxu0
      %v260 = vlaneseq
      %v261 = vand.u32 %v260, 127
      %vm262 = vcmp.lt.s32.totalorder %v261, 6
      %v263 = vsel %vm262, %v213, 0.0
      %v264 = vsel %vm262, %v216, 0.0
      %v265 = vsel %vm262, %v219, 0.0
      %v266 = vsel %vm262, %v222, 0.0
      %v267 = vsel %vm262, %v225, 0.0
      %v268 = vsel %vm262, %v228, 0.0
      %v269 = vsel %vm262, %v231, 0.0
      %v270 = vsel %vm262, %v234, 0.0
      %v271 = vsel %vm262, %v237, 0.0
      %v272 = vsel %vm262, %v240, 0.0
      %v273 = vsel %vm262, %v243, 0.0
      %v274 = vsel %vm262, %v246, 0.0
      %v275 = vsel %vm262, %v249, 0.0
      %v276 = vsel %vm262, %v252, 0.0
      %v277 = vsel %vm262, %v255, 0.0
      %v278 = vsel %vm262, %v258, 0.0
      %v279 = vperm.slane %v167, 0
      %v280 = vmul.f32 %v213, %v279
      %v281 = vmul.f32 %v216, %v279
      %v282 = vmul.f32 %v219, %v279
      %v283 = vmul.f32 %v222, %v279
      %v284 = vmul.f32 %v225, %v279
      %v285 = vmul.f32 %v228, %v279
      %v286 = vmul.f32 %v231, %v279
      %v287 = vmul.f32 %v234, %v279
      %v288 = vmul.f32 %v237, %v279
      %v289 = vmul.f32 %v240, %v279
      %v290 = vmul.f32 %v243, %v279
      %v291 = vmul.f32 %v246, %v279
      %v292 = vmul.f32 %v249, %v279
      %v293 = vmul.f32 %v252, %v279
      %v294 = vmul.f32 %v255, %v279
      %v295 = vmul.f32 %v258, %v279
      %296 = vadd.xlane.f32.xlu0 %v280
      %v297 = vpop.xlane.xlu0 %296
      %298 = vadd.xlane.f32.xlu0 %v281
      %v299 = vpop.xlane.xlu0 %298
      %300 = vadd.xlane.f32.xlu0 %v282
      %v301 = vpop.xlane.xlu0 %300
      %302 = vadd.xlane.f32.xlu0 %v283
      %v303 = vpop.xlane.xlu0 %302
      %304 = vadd.xlane.f32.xlu0 %v284
      %v305 = vpop.xlane.xlu0 %304
      %306 = vadd.xlane.f32.xlu0 %v285
      %v307 = vpop.xlane.xlu0 %306
      %308 = vadd.xlane.f32.xlu0 %v286
      %v309 = vpop.xlane.xlu0 %308
      %310 = vadd.xlane.f32.xlu0 %v287
      %v311 = vpop.xlane.xlu0 %310
      %312 = vadd.xlane.f32.xlu0 %v288
      %v313 = vpop.xlane.xlu0 %312
      %314 = vadd.xlane.f32.xlu0 %v289
      %v315 = vpop.xlane.xlu0 %314
      %316 = vadd.xlane.f32.xlu0 %v290
      %v317 = vpop.xlane.xlu0 %316
      %318 = vadd.xlane.f32.xlu0 %v291
      %v319 = vpop.xlane.xlu0 %318
      %320 = vadd.xlane.f32.xlu0 %v292
      %v321 = vpop.xlane.xlu0 %320
      %322 = vadd.xlane.f32.xlu0 %v293
      %v323 = vpop.xlane.xlu0 %322
      %324 = vadd.xlane.f32.xlu0 %v294
      %v325 = vpop.xlane.xlu0 %324
      %326 = vadd.xlane.f32.xlu0 %v295
      %v327 = vpop.xlane.xlu0 %326
      %v328 = vmul.f32 %v263, %v263
      %v329 = vmul.f32 %v264, %v264
      %v330 = vmul.f32 %v265, %v265
      %v331 = vmul.f32 %v266, %v266
      %v332 = vmul.f32 %v267, %v267
      %v333 = vmul.f32 %v268, %v268
      %v334 = vmul.f32 %v269, %v269
      %v335 = vmul.f32 %v270, %v270
      %v336 = vmul.f32 %v271, %v271
      %v337 = vmul.f32 %v272, %v272
      %v338 = vmul.f32 %v273, %v273
      %v339 = vmul.f32 %v274, %v274
      %v340 = vmul.f32 %v275, %v275
      %v341 = vmul.f32 %v276, %v276
      %v342 = vmul.f32 %v277, %v277
      %v343 = vmul.f32 %v278, %v278
      %344 = vadd.xlane.f32.xlu0 %v328
      %v345 = vpop.xlane.xlu0 %344
      %346 = vadd.xlane.f32.xlu0 %v329
      %v347 = vpop.xlane.xlu0 %346
      %348 = vadd.xlane.f32.xlu0 %v330
      %v349 = vpop.xlane.xlu0 %348
      %350 = vadd.xlane.f32.xlu0 %v331
      %v351 = vpop.xlane.xlu0 %350
      %352 = vadd.xlane.f32.xlu0 %v332
      %v353 = vpop.xlane.xlu0 %352
      %354 = vadd.xlane.f32.xlu0 %v333
      %v355 = vpop.xlane.xlu0 %354
      %356 = vadd.xlane.f32.xlu0 %v334
      %v357 = vpop.xlane.xlu0 %356
      %358 = vadd.xlane.f32.xlu0 %v335
      %v359 = vpop.xlane.xlu0 %358
      %360 = vadd.xlane.f32.xlu0 %v336
      %v361 = vpop.xlane.xlu0 %360
      %362 = vadd.xlane.f32.xlu0 %v337
      %v363 = vpop.xlane.xlu0 %362
      %364 = vadd.xlane.f32.xlu0 %v338
      %v365 = vpop.xlane.xlu0 %364
      %366 = vadd.xlane.f32.xlu0 %v339
      %v367 = vpop.xlane.xlu0 %366
      %368 = vadd.xlane.f32.xlu0 %v340
      %v369 = vpop.xlane.xlu0 %368
      %370 = vadd.xlane.f32.xlu0 %v341
      %v371 = vpop.xlane.xlu0 %370
      %372 = vadd.xlane.f32.xlu0 %v342
      %v373 = vpop.xlane.xlu0 %372
      %374 = vadd.xlane.f32.xlu0 %v343
      %v375 = vpop.xlane.xlu0 %374
      %v376 = vmul.f32 %v167, %v167
      %vm377 = vcmask 1040384
      %v378 = vsel %vm377, %v376, 0.0
      %379 = vadd.xlane.f32.xlu0 %v378
      %v380 = vpop.xlane.xlu0 %379
      %v381 = vrsqrt.pop %v345
      %v382 = vmul.f32 %v381, %v345
      %v383 = vmul.f32 %v382, %v381
      %v384 = vmul.f32 0.5, %v383
      %v385 = vsub.f32 1.5, %v384
      %v386 = vmul.f32 %v381, %v385
      %vm387 = vweird.f32 %v345
      %vm388 = vweird.f32 %v381
      %vm389 = vmor %vm387, %vm388
      %v390 = vsel %vm389, %v381, %v386
      %v391 = vrsqrt.pop %v347
      %v392 = vmul.f32 %v391, %v347
      %v393 = vmul.f32 %v392, %v391
      %v394 = vmul.f32 0.5, %v393
      %v395 = vsub.f32 1.5, %v394
      %v396 = vmul.f32 %v391, %v395
      %vm397 = vweird.f32 %v347
      %vm398 = vweird.f32 %v391
      %vm399 = vmor %vm397, %vm398
      %v400 = vsel %vm399, %v391, %v396
      %v401 = vrsqrt.pop %v349
      %v402 = vmul.f32 %v401, %v349
      %v403 = vmul.f32 %v402, %v401
      %v404 = vmul.f32 0.5, %v403
      %v405 = vsub.f32 1.5, %v404
      %v406 = vmul.f32 %v401, %v405
      %vm407 = vweird.f32 %v349
      %vm408 = vweird.f32 %v401
      %vm409 = vmor %vm407, %vm408
      %v410 = vsel %vm409, %v401, %v406
      %v411 = vrsqrt.pop %v351
      %v412 = vmul.f32 %v411, %v351
      %v413 = vmul.f32 %v412, %v411
      %v414 = vmul.f32 0.5, %v413
      %v415 = vsub.f32 1.5, %v414
      %v416 = vmul.f32 %v411, %v415
      %vm417 = vweird.f32 %v351
      %vm418 = vweird.f32 %v411
      %vm419 = vmor %vm417, %vm418
      %v420 = vsel %vm419, %v411, %v416
      %v421 = vrsqrt.pop %v353
      %v422 = vmul.f32 %v421, %v353
      %v423 = vmul.f32 %v422, %v421
      %v424 = vmul.f32 0.5, %v423
      %v425 = vsub.f32 1.5, %v424
      %v426 = vmul.f32 %v421, %v425
      %vm427 = vweird.f32 %v353
      %vm428 = vweird.f32 %v421
      %vm429 = vmor %vm427, %vm428
      %v430 = vsel %vm429, %v421, %v426
      %v431 = vrsqrt.pop %v355
      %v432 = vmul.f32 %v431, %v355
      %v433 = vmul.f32 %v432, %v431
      %v434 = vmul.f32 0.5, %v433
      %v435 = vsub.f32 1.5, %v434
      %v436 = vmul.f32 %v431, %v435
      %vm437 = vweird.f32 %v355
      %vm438 = vweird.f32 %v431
      %vm439 = vmor %vm437, %vm438
      %v440 = vsel %vm439, %v431, %v436
      %v441 = vrsqrt.pop %v357
      %v442 = vmul.f32 %v441, %v357
      %v443 = vmul.f32 %v442, %v441
      %v444 = vmul.f32 0.5, %v443
      %v445 = vsub.f32 1.5, %v444
      %v446 = vmul.f32 %v441, %v445
      %vm447 = vweird.f32 %v357
      %vm448 = vweird.f32 %v441
      %vm449 = vmor %vm447, %vm448
      %v450 = vsel %vm449, %v441, %v446
      %v451 = vrsqrt.pop %v359
      %v452 = vmul.f32 %v451, %v359
      %v453 = vmul.f32 %v452, %v451
      %v454 = vmul.f32 0.5, %v453
      %v455 = vsub.f32 1.5, %v454
      %v456 = vmul.f32 %v451, %v455
      %vm457 = vweird.f32 %v359
      %vm458 = vweird.f32 %v451
      %vm459 = vmor %vm457, %vm458
      %v460 = vsel %vm459, %v451, %v456
      %v461 = vrsqrt.pop %v361
      %v462 = vmul.f32 %v461, %v361
      %v463 = vmul.f32 %v462, %v461
      %v464 = vmul.f32 0.5, %v463
      %v465 = vsub.f32 1.5, %v464
      %v466 = vmul.f32 %v461, %v465
      %vm467 = vweird.f32 %v361
      %vm468 = vweird.f32 %v461
      %vm469 = vmor %vm467, %vm468
      %v470 = vsel %vm469, %v461, %v466
      %v471 = vrsqrt.pop %v363
      %v472 = vmul.f32 %v471, %v363
      %v473 = vmul.f32 %v472, %v471
      %v474 = vmul.f32 0.5, %v473
      %v475 = vsub.f32 1.5, %v474
      %v476 = vmul.f32 %v471, %v475
      %vm477 = vweird.f32 %v363
      %vm478 = vweird.f32 %v471
      %vm479 = vmor %vm477, %vm478
      %v480 = vsel %vm479, %v471, %v476
      %v481 = vrsqrt.pop %v365
      %v482 = vmul.f32 %v481, %v365
      %v483 = vmul.f32 %v482, %v481
      %v484 = vmul.f32 0.5, %v483
      %v485 = vsub.f32 1.5, %v484
      %v486 = vmul.f32 %v481, %v485
      %vm487 = vweird.f32 %v365
      %vm488 = vweird.f32 %v481
      %vm489 = vmor %vm487, %vm488
      %v490 = vsel %vm489, %v481, %v486
      %v491 = vrsqrt.pop %v367
      %v492 = vmul.f32 %v491, %v367
      %v493 = vmul.f32 %v492, %v491
      %v494 = vmul.f32 0.5, %v493
      %v495 = vsub.f32 1.5, %v494
      %v496 = vmul.f32 %v491, %v495
      %vm497 = vweird.f32 %v367
      %vm498 = vweird.f32 %v491
      %vm499 = vmor %vm497, %vm498
      %v500 = vsel %vm499, %v491, %v496
      %v501 = vrsqrt.pop %v369
      %v502 = vmul.f32 %v501, %v369
      %v503 = vmul.f32 %v502, %v501
      %v504 = vmul.f32 0.5, %v503
      %v505 = vsub.f32 1.5, %v504
      %v506 = vmul.f32 %v501, %v505
      %vm507 = vweird.f32 %v369
      %vm508 = vweird.f32 %v501
      %vm509 = vmor %vm507, %vm508
      %v510 = vsel %vm509, %v501, %v506
      %v511 = vrsqrt.pop %v371
      %v512 = vmul.f32 %v511, %v371
      %v513 = vmul.f32 %v512, %v511
      %v514 = vmul.f32 0.5, %v513
      %v515 = vsub.f32 1.5, %v514
      %v516 = vmul.f32 %v511, %v515
      %vm517 = vweird.f32 %v371
      %vm518 = vweird.f32 %v511
      %vm519 = vmor %vm517, %vm518
      %v520 = vsel %vm519, %v511, %v516
      %v521 = vrsqrt.pop %v373
      %v522 = vmul.f32 %v521, %v373
      %v523 = vmul.f32 %v522, %v521
      %v524 = vmul.f32 0.5, %v523
      %v525 = vsub.f32 1.5, %v524
      %v526 = vmul.f32 %v521, %v525
      %vm527 = vweird.f32 %v373
      %vm528 = vweird.f32 %v521
      %vm529 = vmor %vm527, %vm528
      %v530 = vsel %vm529, %v521, %v526
      %v531 = vrsqrt.pop %v375
      %v532 = vmul.f32 %v531, %v375
      %v533 = vmul.f32 %v532, %v531
      %v534 = vmul.f32 0.5, %v533
      %v535 = vsub.f32 1.5, %v534
      %v536 = vmul.f32 %v531, %v535
      %vm537 = vweird.f32 %v375
      %vm538 = vweird.f32 %v531
      %vm539 = vmor %vm537, %vm538
      %v540 = vsel %vm539, %v531, %v536
      %v541 = vmul.f32 %v297, %v390
      %v542 = vmul.f32 %v299, %v400
      %v543 = vmul.f32 %v301, %v410
      %v544 = vmul.f32 %v303, %v420
      %v545 = vmul.f32 %v305, %v430
      %v546 = vmul.f32 %v307, %v440
      %v547 = vmul.f32 %v309, %v450
      %v548 = vmul.f32 %v311, %v460
      %v549 = vmul.f32 %v313, %v470
      %v550 = vmul.f32 %v315, %v480
      %v551 = vmul.f32 %v317, %v490
      %v552 = vmul.f32 %v319, %v500
      %v553 = vmul.f32 %v321, %v510
      %v554 = vmul.f32 %v323, %v520
      %v555 = vmul.f32 %v325, %v530
      %v556 = vmul.f32 %v327, %v540
      %v557 = vrsqrt.pop %v380
      %v558 = vmul.f32 %v557, %v380
      %v559 = vmul.f32 %v558, %v557
      %v560 = vmul.f32 0.5, %v559
      %v561 = vsub.f32 1.5, %v560
      %v562 = vmul.f32 %v557, %v561
      %vm563 = vweird.f32 %v380
      %vm564 = vweird.f32 %v557
      %vm565 = vmor %vm563, %vm564
      %v566 = vsel %vm565, %v557, %v562
      %v567 = vperm.slane %v566, 0
      %v568 = vmul.f32 %v541, %v567
      %v569 = vmul.f32 %v542, %v567
      %v570 = vmul.f32 %v543, %v567
      %v571 = vmul.f32 %v544, %v567
      %v572 = vmul.f32 %v545, %v567
      %v573 = vmul.f32 %v546, %v567
      %v574 = vmul.f32 %v547, %v567
      %v575 = vmul.f32 %v548, %v567
      %v576 = vmul.f32 %v549, %v567
      %v577 = vmul.f32 %v550, %v567
      %v578 = vmul.f32 %v551, %v567
      %v579 = vmul.f32 %v552, %v567
      %v580 = vmul.f32 %v553, %v567
      %v581 = vmul.f32 %v554, %v567
      %v582 = vmul.f32 %v555, %v567
      %v583 = vmul.f32 %v556, %v567
      %v584 = vsub.f32 1.0, %v568
      %v585 = vsub.f32 1.0, %v569
      %v586 = vsub.f32 1.0, %v570
      %v587 = vsub.f32 1.0, %v571
      %v588 = vsub.f32 1.0, %v572
      %v589 = vsub.f32 1.0, %v573
      %v590 = vsub.f32 1.0, %v574
      %v591 = vsub.f32 1.0, %v575
      %v592 = vsub.f32 1.0, %v576
      %v593 = vsub.f32 1.0, %v577
      %v594 = vsub.f32 1.0, %v578
      %v595 = vsub.f32 1.0, %v579
      %v596 = vsub.f32 1.0, %v580
      %v597 = vsub.f32 1.0, %v581
      %v598 = vsub.f32 1.0, %v582
      %v599 = vsub.f32 1.0, %v583
      %v600 = vmax.f32 %v584, 0.0
      %v601 = vmax.f32 %v585, 0.0
      %v602 = vmax.f32 %v586, 0.0
      %v603 = vmax.f32 %v587, 0.0
      %v604 = vmax.f32 %v588, 0.0
      %v605 = vmax.f32 %v589, 0.0
      %v606 = vmax.f32 %v590, 0.0
      %v607 = vmax.f32 %v591, 0.0
      %v608 = vmax.f32 %v592, 0.0
      %v609 = vmax.f32 %v593, 0.0
      %v610 = vmax.f32 %v594, 0.0
      %v611 = vmax.f32 %v595, 0.0
      %v612 = vmax.f32 %v596, 0.0
      %v613 = vmax.f32 %v597, 0.0
      %v614 = vmax.f32 %v598, 0.0
      %v615 = vmax.f32 %v599, 0.0
      %v616 = vrsqrt.pop %v600
      %v617 = vmul.f32 %v616, %v600
      %v618 = vmul.f32 %v617, %v616
      %v619 = vmul.f32 0.5, %v618
      %v620 = vsub.f32 1.5, %v619
      %v621 = vmul.f32 %v616, %v620
      %v622 = vmul.f32 %v600, %v621
      %vm623 = vcmp.eq.f32.partialorder %v600, inf
      %v624 = vsel %vm623, %v600, %v622
      %vm625 = vcmp.eq.f32.partialorder %v600, 0.0
      %v626 = vand.u32 %v600, 2147483648
      %v627 = vsel %vm625, %v626, %v624
      %v628 = vrsqrt.pop %v601
      %v629 = vmul.f32 %v628, %v601
      %v630 = vmul.f32 %v629, %v628
      %v631 = vmul.f32 0.5, %v630
      %v632 = vsub.f32 1.5, %v631
      %v633 = vmul.f32 %v628, %v632
      %v634 = vmul.f32 %v601, %v633
      %vm635 = vcmp.eq.f32.partialorder %v601, inf
      %v636 = vsel %vm635, %v601, %v634
      %vm637 = vcmp.eq.f32.partialorder %v601, 0.0
      %v638 = vand.u32 %v601, 2147483648
      %v639 = vsel %vm637, %v638, %v636
      %v640 = vrsqrt.pop %v602
      %v641 = vmul.f32 %v640, %v602
      %v642 = vmul.f32 %v641, %v640
      %v643 = vmul.f32 0.5, %v642
      %v644 = vsub.f32 1.5, %v643
      %v645 = vmul.f32 %v640, %v644
      %v646 = vmul.f32 %v602, %v645
      %vm647 = vcmp.eq.f32.partialorder %v602, inf
      %v648 = vsel %vm647, %v602, %v646
      %vm649 = vcmp.eq.f32.partialorder %v602, 0.0
      %v650 = vand.u32 %v602, 2147483648
      %v651 = vsel %vm649, %v650, %v648
      %v652 = vrsqrt.pop %v603
      %v653 = vmul.f32 %v652, %v603
      %v654 = vmul.f32 %v653, %v652
      %v655 = vmul.f32 0.5, %v654
      %v656 = vsub.f32 1.5, %v655
      %v657 = vmul.f32 %v652, %v656
      %v658 = vmul.f32 %v603, %v657
      %vm659 = vcmp.eq.f32.partialorder %v603, inf
      %v660 = vsel %vm659, %v603, %v658
      %vm661 = vcmp.eq.f32.partialorder %v603, 0.0
      %v662 = vand.u32 %v603, 2147483648
      %v663 = vsel %vm661, %v662, %v660
      %v664 = vrsqrt.pop %v604
      %v665 = vmul.f32 %v664, %v604
      %v666 = vmul.f32 %v665, %v664
      %v667 = vmul.f32 0.5, %v666
      %v668 = vsub.f32 1.5, %v667
      %v669 = vmul.f32 %v664, %v668
      %v670 = vmul.f32 %v604, %v669
      %vm671 = vcmp.eq.f32.partialorder %v604, inf
      %v672 = vsel %vm671, %v604, %v670
      %vm673 = vcmp.eq.f32.partialorder %v604, 0.0
      %v674 = vand.u32 %v604, 2147483648
      %v675 = vsel %vm673, %v674, %v672
      %v676 = vrsqrt.pop %v605
      %v677 = vmul.f32 %v676, %v605
      %v678 = vmul.f32 %v677, %v676
      %v679 = vmul.f32 0.5, %v678
      %v680 = vsub.f32 1.5, %v679
      %v681 = vmul.f32 %v676, %v680
      %v682 = vmul.f32 %v605, %v681
      %vm683 = vcmp.eq.f32.partialorder %v605, inf
      %v684 = vsel %vm683, %v605, %v682
      %vm685 = vcmp.eq.f32.partialorder %v605, 0.0
      %v686 = vand.u32 %v605, 2147483648
      %v687 = vsel %vm685, %v686, %v684
      %v688 = vrsqrt.pop %v606
      %v689 = vmul.f32 %v688, %v606
      %v690 = vmul.f32 %v689, %v688
      %v691 = vmul.f32 0.5, %v690
      %v692 = vsub.f32 1.5, %v691
      %v693 = vmul.f32 %v688, %v692
      %v694 = vmul.f32 %v606, %v693
      %vm695 = vcmp.eq.f32.partialorder %v606, inf
      %v696 = vsel %vm695, %v606, %v694
      %vm697 = vcmp.eq.f32.partialorder %v606, 0.0
      %v698 = vand.u32 %v606, 2147483648
      %v699 = vsel %vm697, %v698, %v696
      %v700 = vrsqrt.pop %v607
      %v701 = vmul.f32 %v700, %v607
      %v702 = vmul.f32 %v701, %v700
      %v703 = vmul.f32 0.5, %v702
      %v704 = vsub.f32 1.5, %v703
      %v705 = vmul.f32 %v700, %v704
      %v706 = vmul.f32 %v607, %v705
      %vm707 = vcmp.eq.f32.partialorder %v607, inf
      %v708 = vsel %vm707, %v607, %v706
      %vm709 = vcmp.eq.f32.partialorder %v607, 0.0
      %v710 = vand.u32 %v607, 2147483648
      %v711 = vsel %vm709, %v710, %v708
      %v712 = vrsqrt.pop %v608
      %v713 = vmul.f32 %v712, %v608
      %v714 = vmul.f32 %v713, %v712
      %v715 = vmul.f32 0.5, %v714
      %v716 = vsub.f32 1.5, %v715
      %v717 = vmul.f32 %v712, %v716
      %v718 = vmul.f32 %v608, %v717
      %vm719 = vcmp.eq.f32.partialorder %v608, inf
      %v720 = vsel %vm719, %v608, %v718
      %vm721 = vcmp.eq.f32.partialorder %v608, 0.0
      %v722 = vand.u32 %v608, 2147483648
      %v723 = vsel %vm721, %v722, %v720
      %v724 = vrsqrt.pop %v609
      %v725 = vmul.f32 %v724, %v609
      %v726 = vmul.f32 %v725, %v724
      %v727 = vmul.f32 0.5, %v726
      %v728 = vsub.f32 1.5, %v727
      %v729 = vmul.f32 %v724, %v728
      %v730 = vmul.f32 %v609, %v729
      %vm731 = vcmp.eq.f32.partialorder %v609, inf
      %v732 = vsel %vm731, %v609, %v730
      %vm733 = vcmp.eq.f32.partialorder %v609, 0.0
      %v734 = vand.u32 %v609, 2147483648
      %v735 = vsel %vm733, %v734, %v732
      %v736 = vrsqrt.pop %v610
      %v737 = vmul.f32 %v736, %v610
      %v738 = vmul.f32 %v737, %v736
      %v739 = vmul.f32 0.5, %v738
      %v740 = vsub.f32 1.5, %v739
      %v741 = vmul.f32 %v736, %v740
      %v742 = vmul.f32 %v610, %v741
      %vm743 = vcmp.eq.f32.partialorder %v610, inf
      %v744 = vsel %vm743, %v610, %v742
      %vm745 = vcmp.eq.f32.partialorder %v610, 0.0
      %v746 = vand.u32 %v610, 2147483648
      %v747 = vsel %vm745, %v746, %v744
      %v748 = vrsqrt.pop %v611
      %v749 = vmul.f32 %v748, %v611
      %v750 = vmul.f32 %v749, %v748
      %v751 = vmul.f32 0.5, %v750
      %v752 = vsub.f32 1.5, %v751
      %v753 = vmul.f32 %v748, %v752
      %v754 = vmul.f32 %v611, %v753
      %vm755 = vcmp.eq.f32.partialorder %v611, inf
      %v756 = vsel %vm755, %v611, %v754
      %vm757 = vcmp.eq.f32.partialorder %v611, 0.0
      %v758 = vand.u32 %v611, 2147483648
      %v759 = vsel %vm757, %v758, %v756
      %v760 = vrsqrt.pop %v612
      %v761 = vmul.f32 %v760, %v612
      %v762 = vmul.f32 %v761, %v760
      %v763 = vmul.f32 0.5, %v762
      %v764 = vsub.f32 1.5, %v763
      %v765 = vmul.f32 %v760, %v764
      %v766 = vmul.f32 %v612, %v765
      %vm767 = vcmp.eq.f32.partialorder %v612, inf
      %v768 = vsel %vm767, %v612, %v766
      %vm769 = vcmp.eq.f32.partialorder %v612, 0.0
      %v770 = vand.u32 %v612, 2147483648
      %v771 = vsel %vm769, %v770, %v768
      %v772 = vrsqrt.pop %v613
      %v773 = vmul.f32 %v772, %v613
      %v774 = vmul.f32 %v773, %v772
      %v775 = vmul.f32 0.5, %v774
      %v776 = vsub.f32 1.5, %v775
      %v777 = vmul.f32 %v772, %v776
      %v778 = vmul.f32 %v613, %v777
      %vm779 = vcmp.eq.f32.partialorder %v613, inf
      %v780 = vsel %vm779, %v613, %v778
      %vm781 = vcmp.eq.f32.partialorder %v613, 0.0
      %v782 = vand.u32 %v613, 2147483648
      %v783 = vsel %vm781, %v782, %v780
      %v784 = vrsqrt.pop %v614
      %v785 = vmul.f32 %v784, %v614
      %v786 = vmul.f32 %v785, %v784
      %v787 = vmul.f32 0.5, %v786
      %v788 = vsub.f32 1.5, %v787
      %v789 = vmul.f32 %v784, %v788
      %v790 = vmul.f32 %v614, %v789
      %vm791 = vcmp.eq.f32.partialorder %v614, inf
      %v792 = vsel %vm791, %v614, %v790
      %vm793 = vcmp.eq.f32.partialorder %v614, 0.0
      %v794 = vand.u32 %v614, 2147483648
      %v795 = vsel %vm793, %v794, %v792
      %v796 = vrsqrt.pop %v615
      %v797 = vmul.f32 %v796, %v615
      %v798 = vmul.f32 %v797, %v796
      %v799 = vmul.f32 0.5, %v798
      %v800 = vsub.f32 1.5, %v799
      %v801 = vmul.f32 %v796, %v800
      %v802 = vmul.f32 %v615, %v801
      %vm803 = vcmp.eq.f32.partialorder %v615, inf
      %v804 = vsel %vm803, %v615, %v802
      %vm805 = vcmp.eq.f32.partialorder %v615, 0.0
      %v806 = vand.u32 %v615, 2147483648
      %v807 = vsel %vm805, %v806, %v804
      %v808 = vrcp.pop %v213
      %v809 = vmul.f32 %v213, %v808
      %v810 = vsub.f32 1.0, %v809
      %v811 = vmul.f32 %v808, %v810
      %v812 = vadd.f32 %v808, %v811
      %vm813 = vweird.f32 %v213
      %vm814 = vweird.f32 %v808
      %vm815 = vmor %vm813, %vm814
      %v816 = vsel %vm815, %v808, %v812
      %v817 = vand.u32 2147483647, %v213
      %vm818 = vcmp.eq.f32.partialorder %v817, 8.507059e+37
      %v819 = vand.u32 %v213, 2147483648
      %v820 = vor.u32 1.1754944e-38, %v819
      %v821 = vsel %vm818, %v820, %v816
      %v822 = vrcp.pop %v216
      %v823 = vmul.f32 %v216, %v822
      %v824 = vsub.f32 1.0, %v823
      %v825 = vmul.f32 %v822, %v824
      %v826 = vadd.f32 %v822, %v825
      %vm827 = vweird.f32 %v216
      %vm828 = vweird.f32 %v822
      %vm829 = vmor %vm827, %vm828
      %v830 = vsel %vm829, %v822, %v826
      %v831 = vand.u32 2147483647, %v216
      %vm832 = vcmp.eq.f32.partialorder %v831, 8.507059e+37
      %v833 = vand.u32 %v216, 2147483648
      %v834 = vor.u32 1.1754944e-38, %v833
      %v835 = vsel %vm832, %v834, %v830
      %v836 = vrcp.pop %v219
      %v837 = vmul.f32 %v219, %v836
      %v838 = vsub.f32 1.0, %v837
      %v839 = vmul.f32 %v836, %v838
      %v840 = vadd.f32 %v836, %v839
      %vm841 = vweird.f32 %v219
      %vm842 = vweird.f32 %v836
      %vm843 = vmor %vm841, %vm842
      %v844 = vsel %vm843, %v836, %v840
      %v845 = vand.u32 2147483647, %v219
      %vm846 = vcmp.eq.f32.partialorder %v845, 8.507059e+37
      %v847 = vand.u32 %v219, 2147483648
      %v848 = vor.u32 1.1754944e-38, %v847
      %v849 = vsel %vm846, %v848, %v844
      %v850 = vrcp.pop %v222
      %v851 = vmul.f32 %v222, %v850
      %v852 = vsub.f32 1.0, %v851
      %v853 = vmul.f32 %v850, %v852
      %v854 = vadd.f32 %v850, %v853
      %vm855 = vweird.f32 %v222
      %vm856 = vweird.f32 %v850
      %vm857 = vmor %vm855, %vm856
      %v858 = vsel %vm857, %v850, %v854
      %v859 = vand.u32 2147483647, %v222
      %vm860 = vcmp.eq.f32.partialorder %v859, 8.507059e+37
      %v861 = vand.u32 %v222, 2147483648
      %v862 = vor.u32 1.1754944e-38, %v861
      %v863 = vsel %vm860, %v862, %v858
      %v864 = vrcp.pop %v225
      %v865 = vmul.f32 %v225, %v864
      %v866 = vsub.f32 1.0, %v865
      %v867 = vmul.f32 %v864, %v866
      %v868 = vadd.f32 %v864, %v867
      %vm869 = vweird.f32 %v225
      %vm870 = vweird.f32 %v864
      %vm871 = vmor %vm869, %vm870
      %v872 = vsel %vm871, %v864, %v868
      %v873 = vand.u32 2147483647, %v225
      %vm874 = vcmp.eq.f32.partialorder %v873, 8.507059e+37
      %v875 = vand.u32 %v225, 2147483648
      %v876 = vor.u32 1.1754944e-38, %v875
      %v877 = vsel %vm874, %v876, %v872
      %v878 = vrcp.pop %v228
      %v879 = vmul.f32 %v228, %v878
      %v880 = vsub.f32 1.0, %v879
      %v881 = vmul.f32 %v878, %v880
      %v882 = vadd.f32 %v878, %v881
      %vm883 = vweird.f32 %v228
      %vm884 = vweird.f32 %v878
      %vm885 = vmor %vm883, %vm884
      %v886 = vsel %vm885, %v878, %v882
      %v887 = vand.u32 2147483647, %v228
      %vm888 = vcmp.eq.f32.partialorder %v887, 8.507059e+37
      %v889 = vand.u32 %v228, 2147483648
      %v890 = vor.u32 1.1754944e-38, %v889
      %v891 = vsel %vm888, %v890, %v886
      %v892 = vrcp.pop %v231
      %v893 = vmul.f32 %v231, %v892
      %v894 = vsub.f32 1.0, %v893
      %v895 = vmul.f32 %v892, %v894
      %v896 = vadd.f32 %v892, %v895
      %vm897 = vweird.f32 %v231
      %vm898 = vweird.f32 %v892
      %vm899 = vmor %vm897, %vm898
      %v900 = vsel %vm899, %v892, %v896
      %v901 = vand.u32 2147483647, %v231
      %vm902 = vcmp.eq.f32.partialorder %v901, 8.507059e+37
      %v903 = vand.u32 %v231, 2147483648
      %v904 = vor.u32 1.1754944e-38, %v903
      %v905 = vsel %vm902, %v904, %v900
      %v906 = vrcp.pop %v234
      %v907 = vmul.f32 %v234, %v906
      %v908 = vsub.f32 1.0, %v907
      %v909 = vmul.f32 %v906, %v908
      %v910 = vadd.f32 %v906, %v909
      %vm911 = vweird.f32 %v234
      %vm912 = vweird.f32 %v906
      %vm913 = vmor %vm911, %vm912
      %v914 = vsel %vm913, %v906, %v910
      %v915 = vand.u32 2147483647, %v234
      %vm916 = vcmp.eq.f32.partialorder %v915, 8.507059e+37
      %v917 = vand.u32 %v234, 2147483648
      %v918 = vor.u32 1.1754944e-38, %v917
      %v919 = vsel %vm916, %v918, %v914
      %v920 = vrcp.pop %v237
      %v921 = vmul.f32 %v237, %v920
      %v922 = vsub.f32 1.0, %v921
      %v923 = vmul.f32 %v920, %v922
      %v924 = vadd.f32 %v920, %v923
      %vm925 = vweird.f32 %v237
      %vm926 = vweird.f32 %v920
      %vm927 = vmor %vm925, %vm926
      %v928 = vsel %vm927, %v920, %v924
      %v929 = vand.u32 2147483647, %v237
      %vm930 = vcmp.eq.f32.partialorder %v929, 8.507059e+37
      %v931 = vand.u32 %v237, 2147483648
      %v932 = vor.u32 1.1754944e-38, %v931
      %v933 = vsel %vm930, %v932, %v928
      %v934 = vrcp.pop %v240
      %v935 = vmul.f32 %v240, %v934
      %v936 = vsub.f32 1.0, %v935
      %v937 = vmul.f32 %v934, %v936
      %v938 = vadd.f32 %v934, %v937
      %vm939 = vweird.f32 %v240
      %vm940 = vweird.f32 %v934
      %vm941 = vmor %vm939, %vm940
      %v942 = vsel %vm941, %v934, %v938
      %v943 = vand.u32 2147483647, %v240
      %vm944 = vcmp.eq.f32.partialorder %v943, 8.507059e+37
      %v945 = vand.u32 %v240, 2147483648
      %v946 = vor.u32 1.1754944e-38, %v945
      %v947 = vsel %vm944, %v946, %v942
      %v948 = vrcp.pop %v243
      %v949 = vmul.f32 %v243, %v948
      %v950 = vsub.f32 1.0, %v949
      %v951 = vmul.f32 %v948, %v950
      %v952 = vadd.f32 %v948, %v951
      %vm953 = vweird.f32 %v243
      %vm954 = vweird.f32 %v948
      %vm955 = vmor %vm953, %vm954
      %v956 = vsel %vm955, %v948, %v952
      %v957 = vand.u32 2147483647, %v243
      %vm958 = vcmp.eq.f32.partialorder %v957, 8.507059e+37
      %v959 = vand.u32 %v243, 2147483648
      %v960 = vor.u32 1.1754944e-38, %v959
      %v961 = vsel %vm958, %v960, %v956
      %v962 = vrcp.pop %v246
      %v963 = vmul.f32 %v246, %v962
      %v964 = vsub.f32 1.0, %v963
      %v965 = vmul.f32 %v962, %v964
      %v966 = vadd.f32 %v962, %v965
      %vm967 = vweird.f32 %v246
      %vm968 = vweird.f32 %v962
      %vm969 = vmor %vm967, %vm968
      %v970 = vsel %vm969, %v962, %v966
      %v971 = vand.u32 2147483647, %v246
      %vm972 = vcmp.eq.f32.partialorder %v971, 8.507059e+37
      %v973 = vand.u32 %v246, 2147483648
      %v974 = vor.u32 1.1754944e-38, %v973
      %v975 = vsel %vm972, %v974, %v970
      %v976 = vrcp.pop %v249
      %v977 = vmul.f32 %v249, %v976
      %v978 = vsub.f32 1.0, %v977
      %v979 = vmul.f32 %v976, %v978
      %v980 = vadd.f32 %v976, %v979
      %vm981 = vweird.f32 %v249
      %vm982 = vweird.f32 %v976
      %vm983 = vmor %vm981, %vm982
      %v984 = vsel %vm983, %v976, %v980
      %v985 = vand.u32 2147483647, %v249
      %vm986 = vcmp.eq.f32.partialorder %v985, 8.507059e+37
      %v987 = vand.u32 %v249, 2147483648
      %v988 = vor.u32 1.1754944e-38, %v987
      %v989 = vsel %vm986, %v988, %v984
      %v990 = vrcp.pop %v252
      %v991 = vmul.f32 %v252, %v990
      %v992 = vsub.f32 1.0, %v991
      %v993 = vmul.f32 %v990, %v992
      %v994 = vadd.f32 %v990, %v993
      %vm995 = vweird.f32 %v252
      %vm996 = vweird.f32 %v990
      %vm997 = vmor %vm995, %vm996
      %v998 = vsel %vm997, %v990, %v994
      %v999 = vand.u32 2147483647, %v252
      %vm1000 = vcmp.eq.f32.partialorder %v999, 8.507059e+37
      %v1001 = vand.u32 %v252, 2147483648
      %v1002 = vor.u32 1.1754944e-38, %v1001
      %v1003 = vsel %vm1000, %v1002, %v998
      %v1004 = vrcp.pop %v255
      %v1005 = vmul.f32 %v255, %v1004
      %v1006 = vsub.f32 1.0, %v1005
      %v1007 = vmul.f32 %v1004, %v1006
      %v1008 = vadd.f32 %v1004, %v1007
      %vm1009 = vweird.f32 %v255
      %vm1010 = vweird.f32 %v1004
      %vm1011 = vmor %vm1009, %vm1010
      %v1012 = vsel %vm1011, %v1004, %v1008
      %v1013 = vand.u32 2147483647, %v255
      %vm1014 = vcmp.eq.f32.partialorder %v1013, 8.507059e+37
      %v1015 = vand.u32 %v255, 2147483648
      %v1016 = vor.u32 1.1754944e-38, %v1015
      %v1017 = vsel %vm1014, %v1016, %v1012
      %v1018 = vrcp.pop %v258
      %v1019 = vmul.f32 %v258, %v1018
      %v1020 = vsub.f32 1.0, %v1019
      %v1021 = vmul.f32 %v1018, %v1020
      %v1022 = vadd.f32 %v1018, %v1021
      %vm1023 = vweird.f32 %v258
      %vm1024 = vweird.f32 %v1018
      %vm1025 = vmor %vm1023, %vm1024
      %v1026 = vsel %vm1025, %v1018, %v1022
      %v1027 = vand.u32 2147483647, %v258
      %vm1028 = vcmp.eq.f32.partialorder %v1027, 8.507059e+37
      %v1029 = vand.u32 %v258, 2147483648
      %v1030 = vor.u32 1.1754944e-38, %v1029
      %v1031 = vsel %vm1028, %v1030, %v1026
      %1033 = vset.pattern.permute.xlu0 20
      %1034 = vperm.xlu0 %1033, %v147
      %v1035 = vpop.permute.xlu0 %1034
      %1038 = vset.pattern.permute.xlu0 20
      %1039 = vperm.xlu0 %1038, %v148
      %v1040 = vpop.permute.xlu0 %1039
      %1043 = vset.pattern.permute.xlu0 20
      %1044 = vperm.xlu0 %1043, %v149
      %v1045 = vpop.permute.xlu0 %1044
      %1048 = vset.pattern.permute.xlu0 20
      %1049 = vperm.xlu0 %1048, %v150
      %v1050 = vpop.permute.xlu0 %1049
      %1053 = vset.pattern.permute.xlu0 20
      %1054 = vperm.xlu0 %1053, %v151
      %v1055 = vpop.permute.xlu0 %1054
      %1058 = vset.pattern.permute.xlu0 20
      %1059 = vperm.xlu0 %1058, %v152
      %v1060 = vpop.permute.xlu0 %1059
      %1063 = vset.pattern.permute.xlu0 20
      %1064 = vperm.xlu0 %1063, %v153
      %v1065 = vpop.permute.xlu0 %1064
      %1068 = vset.pattern.permute.xlu0 20
      %1069 = vperm.xlu0 %1068, %v154
      %v1070 = vpop.permute.xlu0 %1069
      %1073 = vset.pattern.permute.xlu0 20
      %1074 = vperm.xlu0 %1073, %v155
      %v1075 = vpop.permute.xlu0 %1074
      %1078 = vset.pattern.permute.xlu0 20
      %1079 = vperm.xlu0 %1078, %v156
      %v1080 = vpop.permute.xlu0 %1079
      %1083 = vset.pattern.permute.xlu0 20
      %1084 = vperm.xlu0 %1083, %v157
      %v1085 = vpop.permute.xlu0 %1084
      %1088 = vset.pattern.permute.xlu0 20
      %1089 = vperm.xlu0 %1088, %v158
      %v1090 = vpop.permute.xlu0 %1089
      %1093 = vset.pattern.permute.xlu0 20
      %1094 = vperm.xlu0 %1093, %v159
      %v1095 = vpop.permute.xlu0 %1094
      %1098 = vset.pattern.permute.xlu0 20
      %1099 = vperm.xlu0 %1098, %v160
      %v1100 = vpop.permute.xlu0 %1099
      %1103 = vset.pattern.permute.xlu0 20
      %1104 = vperm.xlu0 %1103, %v161
      %v1105 = vpop.permute.xlu0 %1104
      %1108 = vset.pattern.permute.xlu0 20
      %1109 = vperm.xlu0 %1108, %v162
      %v1110 = vpop.permute.xlu0 %1109
      %v1112 = vmul.f32 %v1035, %v279
      %v1113 = vmul.f32 %v1040, %v279
      %v1114 = vmul.f32 %v1045, %v279
      %v1115 = vmul.f32 %v1050, %v279
      %v1116 = vmul.f32 %v1055, %v279
      %v1117 = vmul.f32 %v1060, %v279
      %v1118 = vmul.f32 %v1065, %v279
      %v1119 = vmul.f32 %v1070, %v279
      %v1120 = vmul.f32 %v1075, %v279
      %v1121 = vmul.f32 %v1080, %v279
      %v1122 = vmul.f32 %v1085, %v279
      %v1123 = vmul.f32 %v1090, %v279
      %v1124 = vmul.f32 %v1095, %v279
      %v1125 = vmul.f32 %v1100, %v279
      %v1126 = vmul.f32 %v1105, %v279
      %v1127 = vmul.f32 %v1110, %v279
      %1129 = vset.pattern.permute.xlu0 6
      %1130 = vperm.xlu0 %1129, %v821
      %v1131 = vpop.permute.xlu0 %1130
      %1134 = vset.pattern.permute.xlu0 6
      %1135 = vperm.xlu0 %1134, %v835
      %v1136 = vpop.permute.xlu0 %1135
      %1139 = vset.pattern.permute.xlu0 6
      %1140 = vperm.xlu0 %1139, %v849
      %v1141 = vpop.permute.xlu0 %1140
      %1144 = vset.pattern.permute.xlu0 6
      %1145 = vperm.xlu0 %1144, %v863
      %v1146 = vpop.permute.xlu0 %1145
      %1149 = vset.pattern.permute.xlu0 6
      %1150 = vperm.xlu0 %1149, %v877
      %v1151 = vpop.permute.xlu0 %1150
      %1154 = vset.pattern.permute.xlu0 6
      %1155 = vperm.xlu0 %1154, %v891
      %v1156 = vpop.permute.xlu0 %1155
      %1159 = vset.pattern.permute.xlu0 6
      %1160 = vperm.xlu0 %1159, %v905
      %v1161 = vpop.permute.xlu0 %1160
      %1164 = vset.pattern.permute.xlu0 6
      %1165 = vperm.xlu0 %1164, %v919
      %v1166 = vpop.permute.xlu0 %1165
      %1169 = vset.pattern.permute.xlu0 6
      %1170 = vperm.xlu0 %1169, %v933
      %v1171 = vpop.permute.xlu0 %1170
      %1174 = vset.pattern.permute.xlu0 6
      %1175 = vperm.xlu0 %1174, %v947
      %v1176 = vpop.permute.xlu0 %1175
      %1179 = vset.pattern.permute.xlu0 6
      %1180 = vperm.xlu0 %1179, %v961
      %v1181 = vpop.permute.xlu0 %1180
      %1184 = vset.pattern.permute.xlu0 6
      %1185 = vperm.xlu0 %1184, %v975
      %v1186 = vpop.permute.xlu0 %1185
      %1189 = vset.pattern.permute.xlu0 6
      %1190 = vperm.xlu0 %1189, %v989
      %v1191 = vpop.permute.xlu0 %1190
      %1194 = vset.pattern.permute.xlu0 6
      %1195 = vperm.xlu0 %1194, %v1003
      %v1196 = vpop.permute.xlu0 %1195
      %1199 = vset.pattern.permute.xlu0 6
      %1200 = vperm.xlu0 %1199, %v1017
      %v1201 = vpop.permute.xlu0 %1200
      %1204 = vset.pattern.permute.xlu0 6
      %1205 = vperm.xlu0 %1204, %v1031
      %v1206 = vpop.permute.xlu0 %1205
      %v1208 = vmul.f32 %v263, %v1131
      %v1209 = vmul.f32 %v264, %v1136
      %v1210 = vmul.f32 %v265, %v1141
      %v1211 = vmul.f32 %v266, %v1146
      %v1212 = vmul.f32 %v267, %v1151
      %v1213 = vmul.f32 %v268, %v1156
      %v1214 = vmul.f32 %v269, %v1161
      %v1215 = vmul.f32 %v270, %v1166
      %v1216 = vmul.f32 %v271, %v1171
      %v1217 = vmul.f32 %v272, %v1176
      %v1218 = vmul.f32 %v273, %v1181
      %v1219 = vmul.f32 %v274, %v1186
      %v1220 = vmul.f32 %v275, %v1191
      %v1221 = vmul.f32 %v276, %v1196
      %v1222 = vmul.f32 %v277, %v1201
      %v1223 = vmul.f32 %v278, %v1206
      %v1224 = vsub.f32 %v1112, %v1208
      %v1225 = vsub.f32 %v1113, %v1209
      %v1226 = vsub.f32 %v1114, %v1210
      %v1227 = vsub.f32 %v1115, %v1211
      %v1228 = vsub.f32 %v1116, %v1212
      %v1229 = vsub.f32 %v1117, %v1213
      %v1230 = vsub.f32 %v1118, %v1214
      %v1231 = vsub.f32 %v1119, %v1215
      %v1232 = vsub.f32 %v1120, %v1216
      %v1233 = vsub.f32 %v1121, %v1217
      %v1234 = vsub.f32 %v1122, %v1218
      %v1235 = vsub.f32 %v1123, %v1219
      %v1236 = vsub.f32 %v1124, %v1220
      %v1237 = vsub.f32 %v1125, %v1221
      %v1238 = vsub.f32 %v1126, %v1222
      %v1239 = vsub.f32 %v1127, %v1223
      %v1240 = vand.u32 2147483647, %v1224
      %v1241 = vand.u32 2147483647, %v1225
      %v1242 = vand.u32 2147483647, %v1226
      %v1243 = vand.u32 2147483647, %v1227
      %v1244 = vand.u32 2147483647, %v1228
      %v1245 = vand.u32 2147483647, %v1229
      %v1246 = vand.u32 2147483647, %v1230
      %v1247 = vand.u32 2147483647, %v1231
      %v1248 = vand.u32 2147483647, %v1232
      %v1249 = vand.u32 2147483647, %v1233
      %v1250 = vand.u32 2147483647, %v1234
      %v1251 = vand.u32 2147483647, %v1235
      %v1252 = vand.u32 2147483647, %v1236
      %v1253 = vand.u32 2147483647, %v1237
      %v1254 = vand.u32 2147483647, %v1238
      %v1255 = vand.u32 2147483647, %v1239
      %1256 = vadd.xlane.f32.xlu0 %v1240
      %v1257 = vpop.xlane.xlu0 %1256
      %1258 = vadd.xlane.f32.xlu0 %v1241
      %v1259 = vpop.xlane.xlu0 %1258
      %1260 = vadd.xlane.f32.xlu0 %v1242
      %v1261 = vpop.xlane.xlu0 %1260
      %1262 = vadd.xlane.f32.xlu0 %v1243
      %v1263 = vpop.xlane.xlu0 %1262
      %1264 = vadd.xlane.f32.xlu0 %v1244
      %v1265 = vpop.xlane.xlu0 %1264
      %1266 = vadd.xlane.f32.xlu0 %v1245
      %v1267 = vpop.xlane.xlu0 %1266
      %1268 = vadd.xlane.f32.xlu0 %v1246
      %v1269 = vpop.xlane.xlu0 %1268
      %1270 = vadd.xlane.f32.xlu0 %v1247
      %v1271 = vpop.xlane.xlu0 %1270
      %1272 = vadd.xlane.f32.xlu0 %v1248
      %v1273 = vpop.xlane.xlu0 %1272
      %1274 = vadd.xlane.f32.xlu0 %v1249
      %v1275 = vpop.xlane.xlu0 %1274
      %1276 = vadd.xlane.f32.xlu0 %v1250
      %v1277 = vpop.xlane.xlu0 %1276
      %1278 = vadd.xlane.f32.xlu0 %v1251
      %v1279 = vpop.xlane.xlu0 %1278
      %1280 = vadd.xlane.f32.xlu0 %v1252
      %v1281 = vpop.xlane.xlu0 %1280
      %1282 = vadd.xlane.f32.xlu0 %v1253
      %v1283 = vpop.xlane.xlu0 %1282
      %1284 = vadd.xlane.f32.xlu0 %v1254
      %v1285 = vpop.xlane.xlu0 %1284
      %1286 = vadd.xlane.f32.xlu0 %v1255
      %v1287 = vpop.xlane.xlu0 %1286
      %v1288 = vsub.f32 0.0, %v147
      %v1289 = vsub.f32 0.0, %v148
      %v1290 = vsub.f32 0.0, %v149
      %v1291 = vsub.f32 0.0, %v150
      %v1292 = vsub.f32 0.0, %v151
      %v1293 = vsub.f32 0.0, %v152
      %v1294 = vsub.f32 0.0, %v153
      %v1295 = vsub.f32 0.0, %v154
      %v1296 = vsub.f32 0.0, %v155
      %v1297 = vsub.f32 0.0, %v156
      %v1298 = vsub.f32 0.0, %v157
      %v1299 = vsub.f32 0.0, %v158
      %v1300 = vsub.f32 0.0, %v159
      %v1301 = vsub.f32 0.0, %v160
      %v1302 = vsub.f32 0.0, %v161
      %v1303 = vsub.f32 0.0, %v162
      %vm1304 = vcmp.eq.s32.totalorder %v261, 0
      %v1305 = vsel %vm1304, %v627, 0.0
      %v1306 = vsel %vm1304, %v639, 0.0
      %v1307 = vsel %vm1304, %v651, 0.0
      %v1308 = vsel %vm1304, %v663, 0.0
      %v1309 = vsel %vm1304, %v675, 0.0
      %v1310 = vsel %vm1304, %v687, 0.0
      %v1311 = vsel %vm1304, %v699, 0.0
      %v1312 = vsel %vm1304, %v711, 0.0
      %v1313 = vsel %vm1304, %v723, 0.0
      %v1314 = vsel %vm1304, %v735, 0.0
      %v1315 = vsel %vm1304, %v747, 0.0
      %v1316 = vsel %vm1304, %v759, 0.0
      %v1317 = vsel %vm1304, %v771, 0.0
      %v1318 = vsel %vm1304, %v783, 0.0
      %v1319 = vsel %vm1304, %v795, 0.0
      %v1320 = vsel %vm1304, %v807, 0.0
      %vm1321 = vcmp.eq.s32.totalorder %v261, 1
      %v1322 = vsel %vm1321, %v1257, %v1305
      %v1323 = vsel %vm1321, %v1259, %v1306
      %v1324 = vsel %vm1321, %v1261, %v1307
      %v1325 = vsel %vm1321, %v1263, %v1308
      %v1326 = vsel %vm1321, %v1265, %v1309
      %v1327 = vsel %vm1321, %v1267, %v1310
      %v1328 = vsel %vm1321, %v1269, %v1311
      %v1329 = vsel %vm1321, %v1271, %v1312
      %v1330 = vsel %vm1321, %v1273, %v1313
      %v1331 = vsel %vm1321, %v1275, %v1314
      %v1332 = vsel %vm1321, %v1277, %v1315
      %v1333 = vsel %vm1321, %v1279, %v1316
      %v1334 = vsel %vm1321, %v1281, %v1317
      %v1335 = vsel %vm1321, %v1283, %v1318
      %v1336 = vsel %vm1321, %v1285, %v1319
      %v1337 = vsel %vm1321, %v1287, %v1320
      %vm1338 = vcmp.eq.s32.totalorder %v261, 2
      %1340 = vset.pattern.permute.xlu0 20
      %1341 = vperm.xlu0 %1340, %v1288
      %v1342 = vpop.permute.xlu0 %1341
      %1345 = vset.pattern.permute.xlu0 20
      %1346 = vperm.xlu0 %1345, %v1289
      %v1347 = vpop.permute.xlu0 %1346
      %1350 = vset.pattern.permute.xlu0 20
      %1351 = vperm.xlu0 %1350, %v1290
      %v1352 = vpop.permute.xlu0 %1351
      %1355 = vset.pattern.permute.xlu0 20
      %1356 = vperm.xlu0 %1355, %v1291
      %v1357 = vpop.permute.xlu0 %1356
      %1360 = vset.pattern.permute.xlu0 20
      %1361 = vperm.xlu0 %1360, %v1292
      %v1362 = vpop.permute.xlu0 %1361
      %1365 = vset.pattern.permute.xlu0 20
      %1366 = vperm.xlu0 %1365, %v1293
      %v1367 = vpop.permute.xlu0 %1366
      %1370 = vset.pattern.permute.xlu0 20
      %1371 = vperm.xlu0 %1370, %v1294
      %v1372 = vpop.permute.xlu0 %1371
      %1375 = vset.pattern.permute.xlu0 20
      %1376 = vperm.xlu0 %1375, %v1295
      %v1377 = vpop.permute.xlu0 %1376
      %1380 = vset.pattern.permute.xlu0 20
      %1381 = vperm.xlu0 %1380, %v1296
      %v1382 = vpop.permute.xlu0 %1381
      %1385 = vset.pattern.permute.xlu0 20
      %1386 = vperm.xlu0 %1385, %v1297
      %v1387 = vpop.permute.xlu0 %1386
      %1390 = vset.pattern.permute.xlu0 20
      %1391 = vperm.xlu0 %1390, %v1298
      %v1392 = vpop.permute.xlu0 %1391
      %1395 = vset.pattern.permute.xlu0 20
      %1396 = vperm.xlu0 %1395, %v1299
      %v1397 = vpop.permute.xlu0 %1396
      %1400 = vset.pattern.permute.xlu0 20
      %1401 = vperm.xlu0 %1400, %v1300
      %v1402 = vpop.permute.xlu0 %1401
      %1405 = vset.pattern.permute.xlu0 20
      %1406 = vperm.xlu0 %1405, %v1301
      %v1407 = vpop.permute.xlu0 %1406
      %1410 = vset.pattern.permute.xlu0 20
      %1411 = vperm.xlu0 %1410, %v1302
      %v1412 = vpop.permute.xlu0 %1411
      %1415 = vset.pattern.permute.xlu0 20
      %1416 = vperm.xlu0 %1415, %v1303
      %v1417 = vpop.permute.xlu0 %1416
      %v1419 = vsel %vm1338, %v1342, %v1322
      %v1420 = vsel %vm1338, %v1347, %v1323
      %v1421 = vsel %vm1338, %v1352, %v1324
      %v1422 = vsel %vm1338, %v1357, %v1325
      %v1423 = vsel %vm1338, %v1362, %v1326
      %v1424 = vsel %vm1338, %v1367, %v1327
      %v1425 = vsel %vm1338, %v1372, %v1328
      %v1426 = vsel %vm1338, %v1377, %v1329
      %v1427 = vsel %vm1338, %v1382, %v1330
      %v1428 = vsel %vm1338, %v1387, %v1331
      %v1429 = vsel %vm1338, %v1392, %v1332
      %v1430 = vsel %vm1338, %v1397, %v1333
      %v1431 = vsel %vm1338, %v1402, %v1334
      %v1432 = vsel %vm1338, %v1407, %v1335
      %v1433 = vsel %vm1338, %v1412, %v1336
      %v1434 = vsel %vm1338, %v1417, %v1337
      %1435 = vst [vmem:[%s145] sm:$0xff] %v1419
      %1436 = vst [vmem:[%s145 + $0x8] sm:$0xff] %v1420
      %1437 = vst [vmem:[%s145 + $0x10] sm:$0xff] %v1421
      %1438 = vst [vmem:[%s145 + $0x18] sm:$0xff] %v1422
      %1439 = vst [vmem:[%s145 + $0x20] sm:$0xff] %v1423
      %1440 = vst [vmem:[%s145 + $0x28] sm:$0xff] %v1424
      %1441 = vst [vmem:[%s145 + $0x30] sm:$0xff] %v1425
      %1442 = vst [vmem:[%s145 + $0x38] sm:$0xff] %v1426
      %1443 = vst [vmem:[%s145 + $0x40] sm:$0xff] %v1427
      %1444 = vst [vmem:[%s145 + $0x48] sm:$0xff] %v1428
      %1445 = vst [vmem:[%s145 + $0x50] sm:$0xff] %v1429
      %1446 = vst [vmem:[%s145 + $0x58] sm:$0xff] %v1430
      %1447 = vst [vmem:[%s145 + $0x60] sm:$0xff] %v1431
      %1448 = vst [vmem:[%s145 + $0x68] sm:$0xff] %v1432
      %1449 = vst [vmem:[%s145 + $0x70] sm:$0xff] %v1433
      %1450 = vst [vmem:[%s145 + $0x78] sm:$0xff] %v1434
      %s1451 = smul.u32 16, %s13
      %p1452 = scmp.lt.s32.totalorder %s1451, 31
      %s1453 = scalar_select %p1452, %s1451, 31
      %s1454 = smul.addr %s1453, 8
      %s1455 = scalar_lea.vmem %s2, %s1454
      // Predicated region
      $region29: #{forward.1} parent=27 // pred_check
        %p1456 = pneg %p78
      $region30: #{forward.1} parent=27 // pred_check_branch
        %1458 = sbr.rel (%p1456) target = $region32
      $region31: #{forward.1} parent=27 // pred_region
        %s1459 = smul.u32 16, %s13
      $region32: #{forward.1} parent=27 // pred_fallthru
        _
    $region28: #{forward.1} parent=5 // pred_fallthru
      _
    %p1460 = scmp.le.s32.totalorder 2, %s8
    // Predicated region
    $region33: #{forward.1} parent=5 // pred_check
      %p1461 = pneg %p1460
    $region34: #{forward.1} parent=5 // pred_check_branch
      %1463 = sbr.rel (%p1461) target = $region36
    $region35: #{forward.1} parent=5 // pred_region
      %s1464 = ssub.s32 %s8, 2
      // Predicated region
      $region37: #{forward.1} parent=35 // pred_check
        %p1465 = pneg %p84
      $region38: #{forward.1} parent=35 // pred_check_branch
        %1467 = sbr.rel (%p1465) target = $region40
      $region39: #{forward.1} parent=35 // pred_region
        %s1468 = smul.u32 16, %s14
        %p1469 = scmp.lt.s32.totalorder %s1468, 31
        %s1470 = scalar_select %p1469, %s1468, 31
        %s1471 = smul.addr %s1470, 8
        %s1472 = scalar_lea.vmem %s2, %s1471
      $region40: #{forward.1} parent=35 // pred_fallthru
        _
    $region36: #{forward.1} parent=5 // pred_fallthru
      _
  $region6: #{forward.1} parent=0 // loop_footer
    %s12 = sadd.s32 1, %s8
  $region7: #{forward.1} parent=0 // loop_footer_branch
    %7 = sbr.rel target = $region3
  $region8: #{forward.1} parent=0 // loop_exit
    _

</llo_original>
